<compile_context>
chip_gen: v5e
topology: v5e:2x2
jax: 0.10.0
libtpu: 0.0.40
codegen_flags: <defaults>
</compile_context>

<pallas_src>
import jax
import jax.numpy as jnp
from jax.experimental import pallas as pl
from jax.experimental.pallas import tpu as pltpu


_SQRT_2_OVER_PI = 0.7978845608028654
_LANE_CANDIDATES = (2048, 1024, 512, 256, 128)
_MIN_BLOCK_BYTES = 512 << 10       # keep per-block DMAs >= ~512 KiB


def _gelu_kernel(x_ref, o_ref):
    # GELU(x) = 0.5*x*(1 + tanh(c*(x + 0.044715*x^3)))
    #         = x * sigmoid(2*c*x + 2*c*0.044715*x^3)     [exact identity]
    # Compute in f32 for accuracy (v5e has no bf16 VALU/EUP anyway); the
    # sigmoid form cuts VALU ops/elem roughly in half vs the literal formula.
    x = x_ref[...].astype(jnp.float32)
    a = jnp.float32(2.0 * _SQRT_2_OVER_PI)
    b = jnp.float32(2.0 * _SQRT_2_OVER_PI * 0.044715)
    z = x * (a + b * (x * x))
    o_ref[...] = (x * jax.nn.sigmoid(z)).astype(o_ref.dtype)


def _gelu_jnp(x):
    # Pure-JAX path for (rare) sub-128-element tails / tiny inputs; also used
    # as the numerical reference (literal PyTorch formula, f32 accumulation).
    c = jnp.float32(_SQRT_2_OVER_PI)
    xf = x.astype(jnp.float32)
    y = 0.5 * xf * (1.0 + jnp.tanh(c * (xf + 0.044715 * xf * xf * xf)))
    return y.astype(x.dtype)


def _sublane_multiple(dtype) -> int:
    # Native sublane tile height per dtype: f32 -> 8, bf16/f16 -> 16, int8/fp8 -> 32.
    return {4: 8, 2: 16, 1: 32}.get(jnp.dtype(dtype).itemsize, 8)


def _vmem_limit_bytes(block_bytes: int) -> int:
    # Generation-aware VMEM budget: never ask for more than physical VMEM
    # minus ~8 MiB headroom (v7x has only 64 MiB per TensorCore).
    try:
        cap = pltpu.get_tpu_info().vmem_capacity_bytes
    except Exception:  # pragma: no cover - conservative fallback (v7x size)
        cap = 64 << 20
    need = 4 * block_bytes + (8 << 20)   # in + out, double-buffered, + slack
    return int(min(max(32 << 20, need), cap - (8 << 20)))


def _gelu_pallas_flat(flat: jax.Array, target_block_bytes: int) -> jax.Array:
    """Run the kernel on a flat array whose length is a multiple of 128."""
    dtype = flat.dtype
    n = flat.shape[0]
    itemsize = jnp.dtype(dtype).itemsize
    sub = _sublane_multiple(dtype)

    # Widest lane dimension (multiple of 128) that divides n -> lane-dense view.
    L = 128
    for cand in _LANE_CANDIDATES:
        if n % cand == 0:
            L = cand
            break
    rows = n // L
    x2 = flat.reshape(rows, L)

    row_bytes = L * itemsize
    tr_target = max(sub, (target_block_bytes // row_bytes) // sub * sub)
    min_block_rows = max(sub, -(-(_MIN_BLOCK_BYTES // max(row_bytes, 1)) // sub) * sub)

    if rows > tr_target:
        tr = tr_target
    else:
        # Medium input: split into ~8 blocks so each v7x TensorCore gets
        # several pipeline steps (input DMA of block i+1 overlaps compute and
        # writeback of block i), while keeping blocks >= ~512 KiB and
        # sublane-aligned.  Harmless on single-TC v5e/v6e (~0.35 us/step).
        tr = rows
        if rows >= 2 * sub:
            cand = -(-rows // 8)                 # aim for ~8 blocks
            cand = -(-cand // sub) * sub         # round up to sublane multiple
            cand = max(cand, min_block_rows)
            if cand < rows:
                tr = cand

    grid = (pl.cdiv(rows, tr),)
    block_bytes = tr * row_bytes

    out2 = pl.pallas_call(
        _gelu_kernel,
        out_shape=jax.ShapeDtypeStruct((rows, L), dtype),
        grid_spec=pltpu.PrefetchScalarGridSpec(
            num_scalar_prefetch=0,
            grid=grid,
            # TODO(synk): if xprof ever shows exposed input DMA on v7x, add
            # pipeline_mode=pl.Buffered(3) on the input spec (blocks are <=4 MiB).
            in_specs=[pl.BlockSpec((tr, L), lambda i: (i, 0))],
            out_specs=pl.BlockSpec((tr, L), lambda i: (i, 0)),
        ),
        compiler_params=pltpu.CompilerParams(
            dimension_semantics=("parallel",),
            vmem_limit_bytes=_vmem_limit_bytes(block_bytes),
        ),
    )(x2)
    return out2.reshape(-1)


def gelu(x: jax.Array, *, target_block_bytes: int = 4 << 20) -> jax.Array:
    """Tanh-approx GELU matching the PyTorch reference formula."""
    orig_shape = x.shape
    n = x.size
    if n == 0:
        return x

    flat = x.reshape(-1)
    main_n = (n // 128) * 128
    tail_n = n - main_n

    if main_n == 0:
        # < 128 elements: a kernel launch isn't worth it.
        return _gelu_jnp(flat).reshape(orig_shape)

    if tail_n == 0:
        # Common case: whole tensor through the kernel, no pad/slice passes.
        return _gelu_pallas_flat(flat, target_block_bytes).reshape(orig_shape)

    # Rare non-multiple-of-128 size: kernel on the 128-divisible prefix, tiny
    # (<128-element) tail in plain jnp, then stitch.  Avoids the pad+slice
    # round trips that re-stream the full tensor through HBM.
    main_out = _gelu_pallas_flat(flat[:main_n], target_block_bytes)
    tail_out = _gelu_jnp(flat[main_n:])
    return jnp.concatenate([main_out, tail_out]).reshape(orig_shape)


if __name__ == "__main__":
    key = jax.random.PRNGKey(0)

    # Small NCHW-style activation, consistent with the module's typical use.
    x = jax.random.normal(key, (2, 4, 16, 16), dtype=jnp.float32)
    out = jax.block_until_ready(gelu(x))
    ref = jax.block_until_ready(_gelu_jnp(x))
    assert out.shape == x.shape and out.dtype == x.dtype
    assert jnp.allclose(out, ref, atol=1e-5, rtol=1e-5), "mismatch vs reference"

    # Larger input exercising the multi-block / megacore-split path.
    x_big = jax.random.normal(jax.random.PRNGKey(1), (8, 128, 256), dtype=jnp.float32)
    out_big = jax.block_until_ready(gelu(x_big))
    ref_big = jax.block_until_ready(_gelu_jnp(x_big))
    assert jnp.allclose(out_big, ref_big, atol=1e-5, rtol=1e-5), "mismatch (big)"

    # bf16 input exercising the 16-row sublane alignment path.
    x_bf = jax.random.normal(jax.random.PRNGKey(2), (4, 256, 128), dtype=jnp.bfloat16)
    out_bf = jax.block_until_ready(gelu(x_bf))
    ref_bf = jax.block_until_ready(_gelu_jnp(x_bf))
    assert out_bf.dtype == x_bf.dtype
    assert jnp.allclose(out_bf.astype(jnp.float32), ref_bf.astype(jnp.float32),
                        atol=2e-2, rtol=2e-2), "mismatch (bf16)"

    # Non-multiple-of-128 total size -> Pallas prefix + jnp tail path.
    x_odd = jax.random.normal(jax.random.PRNGKey(3), (5, 300), dtype=jnp.float32)
    out_odd = jax.block_until_ready(gelu(x_odd))
    ref_odd = jax.block_until_ready(_gelu_jnp(x_odd))
    assert out_odd.shape == x_odd.shape
    assert jnp.allclose(out_odd, ref_odd, atol=1e-5, rtol=1e-5), "mismatch (odd shape)"

    print("KERNEL_OK")
</pallas_src>

<mosaic_0001>
module attributes {stable_mosaic.version = 11 : i64} {
  func.func @_gelu_kernel(%arg0: i32, %arg1: memref<1x2048xf32, #tpu.memory_space<vmem>>, %arg2: memref<1x2048xf32, #tpu.memory_space<vmem>>) attributes {dimension_semantics = [#tpu.dimension_semantics<parallel>], iteration_bounds = array<i64: 1>, scalar_prefetch = 0 : i64, scratch_operands = 0 : i64, tpu.core_type = #tpu.core_type<tc>, window_params = [{transform_indices = @transform_0, window_bounds = array<i64: 1, 2048>}, {transform_indices = @transform_1, window_bounds = array<i64: 1, 2048>}]} {
    %c0 = arith.constant 0 : index
    %c0_0 = arith.constant 0 : index
    %0 = vector.load %arg1[%c0, %c0_0] : memref<1x2048xf32, #tpu.memory_space<vmem>>, vector<1x2048xf32>
    %1 = arith.mulf %0, %0 : vector<1x2048xf32>
    %cst = arith.constant 0.0713548139 : f32
    %2 = vector.broadcast %cst : f32 to vector<1x2048xf32>
    %3 = arith.mulf %2, %1 : vector<1x2048xf32>
    %cst_1 = arith.constant 1.59576917 : f32
    %4 = vector.broadcast %cst_1 : f32 to vector<1x2048xf32>
    %5 = arith.addf %4, %3 : vector<1x2048xf32>
    %6 = arith.mulf %0, %5 : vector<1x2048xf32>
    %7 = arith.negf %6 : vector<1x2048xf32>
    %8 = math.exp %7 : vector<1x2048xf32>
    %cst_2 = arith.constant 1.000000e+00 : f32
    %9 = vector.broadcast %cst_2 : f32 to vector<1x2048xf32>
    %10 = arith.addf %9, %8 : vector<1x2048xf32>
    %11 = arith.divf %9, %10 : vector<1x2048xf32>
    %12 = arith.mulf %0, %11 : vector<1x2048xf32>
    %c0_3 = arith.constant 0 : index
    %c0_4 = arith.constant 0 : index
    %13 = vector.load %arg2[%c0_3, %c0_4] : memref<1x2048xf32, #tpu.memory_space<vmem>>, vector<1x2048xf32>
    tpu.vector_store %arg2[%c0_3, %c0_4], %12 {strides = array<i32>} : memref<1x2048xf32, #tpu.memory_space<vmem>>, vector<1x2048xf32>,
    return
  }
  func.func @transform_0(%arg0: i32) -> (i32, i32) {
    %c0_i32 = arith.constant 0 : i32
    %c0_i32_0 = arith.constant 0 : i32
    return %arg0, %c0_i32 : i32, i32
  }
  func.func @transform_1(%arg0: i32) -> (i32, i32) {
    %c0_i32 = arith.constant 0 : i32
    %c0_i32_0 = arith.constant 0 : i32
    return %arg0, %c0_i32 : i32, i32
  }
}

</mosaic_0001>

<llo_original>
// kernel: tpu_custom_call.1
$region0: #{tpu_custom_call.1}
  #allocation0 [shape = 'u32[]', space=smem, size = 0x4, offset = 0x4, fixed_abs, tag = 'smem constant byte address 0x4 - core index']
  #allocation1 [shape = 'u32[72,128]{1,0:T(1,128)}', space=vmem, size = 0x9000, scoped, tag = 'internal scratch']
  %s0 = inlined_call_operand.hbm [shape: f32[1,2048], index: 0, kind: input, shape index: {}]
  %s1 = inlined_call_operand.hbm [shape: f32[1,2048], index: 1, kind: output, shape index: {}]
  %s2 = sld [smem:[#allocation0]]
  $region18: #{tpu_custom_call.1} parent=0
    _
  %s4 = ssub.s32 1, %s2
  %s5 = scalar_select 0, %s4, %s2
  $region1: #{tpu_custom_call.1} parent=0
    #allocation2 [shape = 'u8[8192]{0}', space=vmem, size = 0x2000, scoped, tag = 'input window, operand 0, single buffered']
    #allocation3 [shape = 's32[1]{0}', space=sflag, size = 0x4, scoped, tag = 'scoped memory for tpu_custom_call.1']
    #allocation4 [shape = 's32[1]{0}', space=sflag, size = 0x4, scoped, tag = 'scoped memory for tpu_custom_call.1']
    #allocation5 [shape = 'u8[8192]{0}', space=vmem, size = 0x2000, scoped, tag = 'output window, operand 0, single buffered']
    %6 = vsyncpa [#allocation3], 0
    %7 = vsyncpa [#allocation4], 0
    // Predicated region
    $region2: #{tpu_custom_call.1} parent=1 // pred_check
      _
    $region3: #{tpu_custom_call.1} parent=1 // pred_check_branch
      %9 = sbr.rel (0) target = $region5
    $region4: #{tpu_custom_call.1} parent=1 // pred_region
      %11 = vsyncadd [#allocation3], 0
      %s13 = sshll.u32 %s0, 4
      %s14 = int_to_ptr.hbm [resolvable:$true] %s13
      %s15 = sshll.u32 [#allocation2], 4
      %s16 = int_to_ptr.vmem [resolvable:$true] %s15
      %18 = dma.hbm_to_vmem [thread:$0]  %s14, 256, %s16, [#allocation3]
    $region5: #{tpu_custom_call.1} parent=1 // pred_fallthru
      _
    // Predicated region
    $region6: #{tpu_custom_call.1} parent=1 // pred_check
      _
    $region7: #{tpu_custom_call.1} parent=1 // pred_check_branch
      %20 = sbr.rel (0) target = $region9
    $region8: #{tpu_custom_call.1} parent=1 // pred_region
      %22 = dma.done [#allocation3], 256
    $region9: #{tpu_custom_call.1} parent=1 // pred_fallthru
      _
    %v23 = vld [vmem:[#allocation2] sm:$0xff]
    %v24 = vld [vmem:[#allocation2 + $0x8] sm:$0xff]
    %v25 = vmul.f32 %v23, %v23
    %v26 = vmul.f32 %v24, %v24
    %v27 = vmul.f32 %v25, 0.071354814
    %v28 = vmul.f32 %v26, 0.071354814
    %v29 = vadd.f32 %v27, 1.5957692
    %v30 = vadd.f32 %v28, 1.5957692
    %v31 = vmul.f32 %v23, %v29
    %v32 = vmul.f32 %v24, %v30
    %v33 = vxor.u32 %v31, 2147483648
    %v34 = vxor.u32 %v32, 2147483648
    %v35 = vmul.f32 %v33, 1.442695
    %v36 = vpow.pop %v35
    %v37 = vmul.f32 %v34, 1.442695
    %v38 = vpow.pop %v37
    %v39 = vadd.f32 %v36, 1.0
    %v40 = vadd.f32 %v38, 1.0
    %v41 = vrcp.pop %v39
    %v42 = vmul.f32 %v39, %v41
    %v43 = vsub.f32 1.0, %v42
    %v44 = vmul.f32 %v41, %v43
    %v45 = vadd.f32 %v41, %v44
    %vm46 = vweird.f32 %v39
    %vm47 = vweird.f32 %v41
    %vm48 = vmor %vm46, %vm47
    %v49 = vsel %vm48, %v41, %v45
    %v50 = vand.u32 2147483647, %v39
    %vm51 = vcmp.eq.f32.partialorder %v50, 8.507059e+37
    %v52 = vand.u32 %v39, 2147483648
    %v53 = vor.u32 1.1754944e-38, %v52
    %v54 = vsel %vm51, %v53, %v49
    %v55 = vmul.f32 1.0, %v54
    %v56 = vrcp.pop %v40
    %v57 = vmul.f32 %v40, %v56
    %v58 = vsub.f32 1.0, %v57
    %v59 = vmul.f32 %v56, %v58
    %v60 = vadd.f32 %v56, %v59
    %vm61 = vweird.f32 %v40
    %vm62 = vweird.f32 %v56
    %vm63 = vmor %vm61, %vm62
    %v64 = vsel %vm63, %v56, %v60
    %v65 = vand.u32 2147483647, %v40
    %vm66 = vcmp.eq.f32.partialorder %v65, 8.507059e+37
    %v67 = vand.u32 %v40, 2147483648
    %v68 = vor.u32 1.1754944e-38, %v67
    %v69 = vsel %vm66, %v68, %v64
    %v70 = vmul.f32 1.0, %v69
    %v71 = vmul.f32 %v23, %v55
    %v72 = vmul.f32 %v24, %v70
    %73 = vst [vmem:[#allocation5] sm:$0xff] %v71
    %74 = vst [vmem:[#allocation5 + $0x8] sm:$0xff] %v72
    // Predicated region
    $region10: #{tpu_custom_call.1} parent=1 // pred_check
      _
    $region11: #{tpu_custom_call.1} parent=1 // pred_check_branch
      %76 = sbr.rel (0) target = $region13
    $region12: #{tpu_custom_call.1} parent=1 // pred_region
      %78 = vsyncadd [#allocation4], 0
      %s80 = sshll.u32 [#allocation5], 4
      %s81 = int_to_ptr.vmem [resolvable:$true] %s80
      %s82 = sshll.u32 %s1, 4
      %s83 = int_to_ptr.hbm [resolvable:$true] %s82
      %85 = dma.vmem_to_hbm [thread:$0]  %s81, 256, %s83, [#allocation4]
    $region13: #{tpu_custom_call.1} parent=1 // pred_fallthru
      _
    // Predicated region
    $region14: #{tpu_custom_call.1} parent=1 // pred_check
      _
    $region15: #{tpu_custom_call.1} parent=1 // pred_check_branch
      %87 = sbr.rel (0) target = $region17
    $region16: #{tpu_custom_call.1} parent=1 // pred_region
      %89 = dma.done [#allocation4], 256
    $region17: #{tpu_custom_call.1} parent=1 // pred_fallthru
      _
    %90 = vsyncpa [#allocation3], 1
    %91 = vsyncpa [#allocation4], 1

</llo_original>
